<compile_context>
chip_gen: v7x
topology: tpu7x:2x2x1
jax: 0.10.0
libtpu: 0.0.40
codegen_flags: <defaults>
</compile_context>

<pallas_src>
import jax
import jax.numpy as jnp
from jax import lax
from jax.experimental import pallas as pl
from jax.experimental.pallas import tpu as pltpu


def _cdiv(a: int, b: int) -> int:
    return -(-a // b)


def _round_up(a: int, b: int) -> int:
    return _cdiv(a, b) * b


def _make_dendritic_phi_kernel(n_bases: int, rb: int, compute_dtype,
                               hoist_params: bool, row_unroll, basis_unroll: int):
    """Builds the kernel body.

    h_ref, a_ref: (n_bases, rb, Zp)   basis thresholds / alpha, pre-broadcast
                                      along the sublane axis (resident blocks).
    z_ref, o_ref: (tb, Zp)            batch tile of the latent state / output.
    """

    def kernel(h_ref, a_ref, z_ref, o_ref):
        n_row_blocks = z_ref.shape[0] // rb

        if hoist_params:
            # Loaded once per grid step; live in vregs across the whole row loop.
            h_rows = [h_ref[b].astype(compute_dtype) for b in range(n_bases)]
            a_rows = [a_ref[b].astype(compute_dtype) for b in range(n_bases)]

        def row_block(r, carry):
            i = pl.multiple_of(r * rb, rb)
            zblk = z_ref[pl.ds(i, rb), :].astype(compute_dtype)

            if hoist_params:
                acc = jnp.maximum(zblk - h_rows[0], 0.0) * a_rows[0]
                for b in range(1, n_bases):
                    acc = acc + jnp.maximum(zblk - h_rows[b], 0.0) * a_rows[b]
            else:
                acc = (jnp.maximum(zblk - h_ref[0].astype(compute_dtype), 0.0)
                       * a_ref[0].astype(compute_dtype))
                if n_bases > 1:
                    if n_bases <= 32:
                        for b in range(1, n_bases):
                            acc = acc + (jnp.maximum(
                                zblk - h_ref[b].astype(compute_dtype), 0.0)
                                * a_ref[b].astype(compute_dtype))
                    else:
                        def basis_body(b, a_acc):
                            hb = h_ref[b].astype(compute_dtype)
                            ab = a_ref[b].astype(compute_dtype)
                            return a_acc + jnp.maximum(zblk - hb, 0.0) * ab
                        acc = lax.fori_loop(1, n_bases, basis_body, acc,
                                            unroll=basis_unroll)

            o_ref[pl.ds(i, rb), :] = acc.astype(o_ref.dtype)
            return carry

        lax.fori_loop(0, n_row_blocks, row_block, 0, unroll=row_unroll)

    return kernel


def dendritic_phi_forward(z: jax.Array, H: jax.Array, alpha: jax.Array, *,
                          tb: int | None = None,
                          compute_dtype=None,
                          out_dtype=None,
                          vmem_limit_bytes: int | None = None) -> jax.Array:
    """Computes relu(z[..., None] - H) @ alpha with a Pallas TPU kernel.

    z:     (..., z_dim)
    H:     (1, z_dim, n_bases)  (PyTorch parameter layout) or (z_dim, n_bases)
    alpha: (n_bases,)
    Returns an array with the same shape as z (dtype defaults to z.dtype).
    """
    orig_shape = z.shape
    Z = orig_shape[-1]
    z2 = z.reshape(-1, Z)
    N = z2.shape[0]

    if H.ndim == 3:
        H = H[0]                                  # (z_dim, n_bases)
    assert H.shape[0] == Z
    n_bases = H.shape[1]
    assert alpha.shape == (n_bases,)

    bf16 = jnp.dtype(jnp.bfloat16)
    if out_dtype is None:
        # Keep I/O at the latent dtype (halves HBM writes for bf16 models).
        out_dtype = z.dtype
    if compute_dtype is None:
        # bf16 arithmetic when the latent is bf16 (2x VALU density on v6e/v7x;
        # on v5e the compiler upcasts internally, still correct).
        compute_dtype = jnp.bfloat16 if jnp.dtype(z.dtype) == bf16 else jnp.float32
    compute_dtype = jnp.dtype(compute_dtype)

    # One-vreg-tall row block: 8 rows f32, 16 rows packed bf16.
    rb = 16 if compute_dtype == bf16 else 8

    # Lane-dense parameter layout: each basis is one row of length Z.
    h_bz = jnp.transpose(H, (1, 0)).astype(compute_dtype)                 # (n_bases, Z)
    a_bz = jnp.broadcast_to(alpha.astype(compute_dtype)[:, None],
                            (n_bases, Z))                                 # (n_bases, Z)

    # --- lane packing for small z_dim (avoid masked vst.msk stores) --------
    pack = 1
    Zp = Z
    z_p = z2
    N_phys = N
    if Z < 128 and 128 % Z == 0:
        pack = 128 // Z
        Zp = Z * pack
        h_bz = jnp.tile(h_bz, (1, pack))
        a_bz = jnp.tile(a_bz, (1, pack))
        N_phys = _cdiv(N, pack)
        row_pad = N_phys * pack - N
        if row_pad:
            z_p = jnp.concatenate([z_p, jnp.zeros((row_pad, Z), z_p.dtype)], 0)
        z_p = z_p.reshape(N_phys, Zp)
    # TODO(synk): z_dim that neither reaches 128 nor divides it falls back to a
    # full-extent (partially masked) lane block; a pad-to-128 path could help.

    # Pre-broadcast params over the sublane axis so the splat rides the load
    # slot (no per-vreg VALU broadcasts inside the basis loop).
    h_in = jnp.broadcast_to(h_bz[:, None, :], (n_bases, rb, Zp))
    a_in = jnp.broadcast_to(a_bz[:, None, :], (n_bases, rb, Zp))

    # --- batch tile / grid selection ---------------------------------------
    itemsize = jnp.dtype(z_p.dtype).itemsize
    row_bytes = Zp * itemsize
    target_tile_bytes = 1 << 20     # ~1 MiB z tiles; VALU-bound, so modest is fine
    if tb is None:
        tb = max(rb, (target_tile_bytes // max(row_bytes, 1)) // rb * rb)
    else:
        tb = max(rb, (tb // rb) * rb)
    if N_phys >= 2 * rb:
        # Keep >= 2 grid steps so v7x can shard the batch axis over both TCs.
        tb = min(tb, max(rb, _round_up(_cdiv(N_phys, 2), rb)))
    tb = min(tb, max(rb, _round_up(N_phys, rb)))
    steps = _cdiv(N_phys, tb)
    if steps > 1 and steps % 2 == 1:
        steps += 1                  # even, balanced split across 2 TensorCores
    N_grid = steps * tb
    if N_grid != N_phys:
        z_p = jnp.concatenate(
            [z_p, jnp.zeros((N_grid - N_phys, Zp), z_p.dtype)], axis=0)

    # --- kernel configuration ----------------------------------------------
    vregs_per_param_row = _cdiv(Zp, 128)
    hoist_params = 2 * n_bases * vregs_per_param_row <= 36   # fits in 64-vreg file
    n_row_blocks = tb // rb
    row_unroll = True if n_row_blocks <= 4 else 2
    basis_unroll = 8

    kernel = _make_dendritic_phi_kernel(n_bases, rb, compute_dtype,
                                        hoist_params, row_unroll, basis_unroll)

    if vmem_limit_bytes is None:
        # Budget against v7x's 64 MiB physical VMEM (cap at 48 MiB).
        param_bytes = 2 * n_bases * rb * Zp * compute_dtype.itemsize
        io_bytes = tb * Zp * (itemsize + jnp.dtype(out_dtype).itemsize)
        vmem_limit_bytes = min(48 << 20,
                               max(16 << 20, 2 * io_bytes + 2 * param_bytes + (4 << 20)))

    out = pl.pallas_call(
        kernel,
        out_shape=jax.ShapeDtypeStruct((N_grid, Zp), out_dtype),
        grid_spec=pltpu.PrefetchScalarGridSpec(
            num_scalar_prefetch=0,
            grid=(steps,),
            in_specs=[
                pl.BlockSpec((n_bases, rb, Zp), lambda i: (0, 0, 0)),  # H (resident)
                pl.BlockSpec((n_bases, rb, Zp), lambda i: (0, 0, 0)),  # alpha (resident)
                pl.BlockSpec((tb, Zp), lambda i: (i, 0)),              # z batch tile
            ],
            out_specs=pl.BlockSpec((tb, Zp), lambda i: (i, 0)),
        ),
        compiler_params=pltpu.CompilerParams(
            dimension_semantics=("parallel",),
            vmem_limit_bytes=int(vmem_limit_bytes),
        ),
    )(h_in, a_in, z_p)

    out = out[:N_phys]
    if pack > 1:
        out = out.reshape(N_phys * pack, Z)[:N]
    return out.reshape(orig_shape)


if __name__ == "__main__":
    key = jax.random.PRNGKey(0)
    k_h, k_a, k_z = jax.random.split(key, 3)

    # --- main f32 check (matches the PyTorch module exactly) ---------------
    batch, z_dim, n_bases = 8, 128, 16
    H = jax.random.normal(k_h, (1, z_dim, n_bases), dtype=jnp.float32)
    alpha = jax.random.normal(k_a, (n_bases,), dtype=jnp.float32)
    z = jax.random.normal(k_z, (batch, z_dim), dtype=jnp.float32)

    out = jax.block_until_ready(dendritic_phi_forward(z, H, alpha))
    ref = jnp.maximum(z[..., None] - H[0][None, :, :], 0.0) @ alpha
    assert out.shape == ref.shape and out.dtype == ref.dtype
    assert jnp.allclose(out, ref, atol=1e-5, rtol=1e-5)

    # --- bf16 fast path (v6e/v7x VALU win; looser tolerance) ---------------
    zb = jax.random.normal(k_z, (32, z_dim), dtype=jnp.bfloat16)
    Hb, ab = H.astype(jnp.bfloat16), alpha.astype(jnp.bfloat16)
    out_b = jax.block_until_ready(dendritic_phi_forward(zb, Hb, ab))
    ref_b = (jnp.maximum(zb.astype(jnp.float32)[..., None]
                         - Hb[0].astype(jnp.float32)[None, :, :], 0.0)
             @ ab.astype(jnp.float32))
    assert out_b.shape == ref_b.shape
    assert jnp.allclose(out_b.astype(jnp.float32), ref_b, atol=0.25, rtol=0.1)

    # --- small-z_dim lane-packing path --------------------------------------
    z_s = jax.random.normal(k_z, (10, 32), dtype=jnp.float32)
    H_s = jax.random.normal(k_h, (1, 32, 4), dtype=jnp.float32)
    a_s = jax.random.normal(k_a, (4,), dtype=jnp.float32)
    out_s = jax.block_until_ready(dendritic_phi_forward(z_s, H_s, a_s))
    ref_s = jnp.maximum(z_s[..., None] - H_s[0][None, :, :], 0.0) @ a_s
    assert out_s.shape == ref_s.shape
    assert jnp.allclose(out_s, ref_s, atol=1e-5, rtol=1e-5)

    print("KERNEL_OK")
</pallas_src>

<mosaic_0001>
module attributes {stable_mosaic.version = 11 : i64} {
  func.func @kernel(%arg0: i32, %arg1: memref<16x8x128xf32, #tpu.memory_space<vmem>>, %arg2: memref<16x8x128xf32, #tpu.memory_space<vmem>>, %arg3: memref<8x128xf32, #tpu.memory_space<vmem>>, %arg4: memref<8x128xf32, #tpu.memory_space<vmem>>) attributes {dimension_semantics = [#tpu.dimension_semantics<parallel>], iteration_bounds = array<i64: 1>, scalar_prefetch = 0 : i64, scratch_operands = 0 : i64, tpu.core_type = #tpu.core_type<tc>, window_params = [{pipeline_mode = #tpu.pipeline_mode<synchronous>, transform_indices = @transform_0, window_bounds = array<i64: 16, 8, 128>}, {pipeline_mode = #tpu.pipeline_mode<synchronous>, transform_indices = @transform_1, window_bounds = array<i64: 16, 8, 128>}, {transform_indices = @transform_2, window_bounds = array<i64: 8, 128>}, {transform_indices = @transform_3, window_bounds = array<i64: 8, 128>}]} {
    %c0 = arith.constant 0 : index
    %c0_0 = arith.constant 0 : index
    %c0_1 = arith.constant 0 : index
    %0 = vector.load %arg1[%c0, %c0_0, %c0_1] : memref<16x8x128xf32, #tpu.memory_space<vmem>>, vector<1x8x128xf32>
    %1 = vector.shape_cast %0 : vector<1x8x128xf32> to vector<8x128xf32>
    %c1 = arith.constant 1 : index
    %c0_2 = arith.constant 0 : index
    %c0_3 = arith.constant 0 : index
    %2 = vector.load %arg1[%c1, %c0_2, %c0_3] : memref<16x8x128xf32, #tpu.memory_space<vmem>>, vector<1x8x128xf32>
    %3 = vector.shape_cast %2 : vector<1x8x128xf32> to vector<8x128xf32>
    %c2 = arith.constant 2 : index
    %c0_4 = arith.constant 0 : index
    %c0_5 = arith.constant 0 : index
    %4 = vector.load %arg1[%c2, %c0_4, %c0_5] : memref<16x8x128xf32, #tpu.memory_space<vmem>>, vector<1x8x128xf32>
    %5 = vector.shape_cast %4 : vector<1x8x128xf32> to vector<8x128xf32>
    %c3 = arith.constant 3 : index
    %c0_6 = arith.constant 0 : index
    %c0_7 = arith.constant 0 : index
    %6 = vector.load %arg1[%c3, %c0_6, %c0_7] : memref<16x8x128xf32, #tpu.memory_space<vmem>>, vector<1x8x128xf32>
    %7 = vector.shape_cast %6 : vector<1x8x128xf32> to vector<8x128xf32>
    %c4 = arith.constant 4 : index
    %c0_8 = arith.constant 0 : index
    %c0_9 = arith.constant 0 : index
    %8 = vector.load %arg1[%c4, %c0_8, %c0_9] : memref<16x8x128xf32, #tpu.memory_space<vmem>>, vector<1x8x128xf32>
    %9 = vector.shape_cast %8 : vector<1x8x128xf32> to vector<8x128xf32>
    %c5 = arith.constant 5 : index
    %c0_10 = arith.constant 0 : index
    %c0_11 = arith.constant 0 : index
    %10 = vector.load %arg1[%c5, %c0_10, %c0_11] : memref<16x8x128xf32, #tpu.memory_space<vmem>>, vector<1x8x128xf32>
    %11 = vector.shape_cast %10 : vector<1x8x128xf32> to vector<8x128xf32>
    %c6 = arith.constant 6 : index
    %c0_12 = arith.constant 0 : index
    %c0_13 = arith.constant 0 : index
    %12 = vector.load %arg1[%c6, %c0_12, %c0_13] : memref<16x8x128xf32, #tpu.memory_space<vmem>>, vector<1x8x128xf32>
    %13 = vector.shape_cast %12 : vector<1x8x128xf32> to vector<8x128xf32>
    %c7 = arith.constant 7 : index
    %c0_14 = arith.constant 0 : index
    %c0_15 = arith.constant 0 : index
    %14 = vector.load %arg1[%c7, %c0_14, %c0_15] : memref<16x8x128xf32, #tpu.memory_space<vmem>>, vector<1x8x128xf32>
    %15 = vector.shape_cast %14 : vector<1x8x128xf32> to vector<8x128xf32>
    %c8 = arith.constant 8 : index
    %c0_16 = arith.constant 0 : index
    %c0_17 = arith.constant 0 : index
    %16 = vector.load %arg1[%c8, %c0_16, %c0_17] : memref<16x8x128xf32, #tpu.memory_space<vmem>>, vector<1x8x128xf32>
    %17 = vector.shape_cast %16 : vector<1x8x128xf32> to vector<8x128xf32>
    %c9 = arith.constant 9 : index
    %c0_18 = arith.constant 0 : index
    %c0_19 = arith.constant 0 : index
    %18 = vector.load %arg1[%c9, %c0_18, %c0_19] : memref<16x8x128xf32, #tpu.memory_space<vmem>>, vector<1x8x128xf32>
    %19 = vector.shape_cast %18 : vector<1x8x128xf32> to vector<8x128xf32>
    %c10 = arith.constant 10 : index
    %c0_20 = arith.constant 0 : index
    %c0_21 = arith.constant 0 : index
    %20 = vector.load %arg1[%c10, %c0_20, %c0_21] : memref<16x8x128xf32, #tpu.memory_space<vmem>>, vector<1x8x128xf32>
    %21 = vector.shape_cast %20 : vector<1x8x128xf32> to vector<8x128xf32>
    %c11 = arith.constant 11 : index
    %c0_22 = arith.constant 0 : index
    %c0_23 = arith.constant 0 : index
    %22 = vector.load %arg1[%c11, %c0_22, %c0_23] : memref<16x8x128xf32, #tpu.memory_space<vmem>>, vector<1x8x128xf32>
    %23 = vector.shape_cast %22 : vector<1x8x128xf32> to vector<8x128xf32>
    %c12 = arith.constant 12 : index
    %c0_24 = arith.constant 0 : index
    %c0_25 = arith.constant 0 : index
    %24 = vector.load %arg1[%c12, %c0_24, %c0_25] : memref<16x8x128xf32, #tpu.memory_space<vmem>>, vector<1x8x128xf32>
    %25 = vector.shape_cast %24 : vector<1x8x128xf32> to vector<8x128xf32>
    %c13 = arith.constant 13 : index
    %c0_26 = arith.constant 0 : index
    %c0_27 = arith.constant 0 : index
    %26 = vector.load %arg1[%c13, %c0_26, %c0_27] : memref<16x8x128xf32, #tpu.memory_space<vmem>>, vector<1x8x128xf32>
    %27 = vector.shape_cast %26 : vector<1x8x128xf32> to vector<8x128xf32>
    %c14 = arith.constant 14 : index
    %c0_28 = arith.constant 0 : index
    %c0_29 = arith.constant 0 : index
    %28 = vector.load %arg1[%c14, %c0_28, %c0_29] : memref<16x8x128xf32, #tpu.memory_space<vmem>>, vector<1x8x128xf32>
    %29 = vector.shape_cast %28 : vector<1x8x128xf32> to vector<8x128xf32>
    %c15 = arith.constant 15 : index
    %c0_30 = arith.constant 0 : index
    %c0_31 = arith.constant 0 : index
    %30 = vector.load %arg1[%c15, %c0_30, %c0_31] : memref<16x8x128xf32, #tpu.memory_space<vmem>>, vector<1x8x128xf32>
    %31 = vector.shape_cast %30 : vector<1x8x128xf32> to vector<8x128xf32>
    %c0_32 = arith.constant 0 : index
    %c0_33 = arith.constant 0 : index
    %c0_34 = arith.constant 0 : index
    %32 = vector.load %arg2[%c0_32, %c0_33, %c0_34] : memref<16x8x128xf32, #tpu.memory_space<vmem>>, vector<1x8x128xf32>
    %33 = vector.shape_cast %32 : vector<1x8x128xf32> to vector<8x128xf32>
    %c1_35 = arith.constant 1 : index
    %c0_36 = arith.constant 0 : index
    %c0_37 = arith.constant 0 : index
    %34 = vector.load %arg2[%c1_35, %c0_36, %c0_37] : memref<16x8x128xf32, #tpu.memory_space<vmem>>, vector<1x8x128xf32>
    %35 = vector.shape_cast %34 : vector<1x8x128xf32> to vector<8x128xf32>
    %c2_38 = arith.constant 2 : index
    %c0_39 = arith.constant 0 : index
    %c0_40 = arith.constant 0 : index
    %36 = vector.load %arg2[%c2_38, %c0_39, %c0_40] : memref<16x8x128xf32, #tpu.memory_space<vmem>>, vector<1x8x128xf32>
    %37 = vector.shape_cast %36 : vector<1x8x128xf32> to vector<8x128xf32>
    %c3_41 = arith.constant 3 : index
    %c0_42 = arith.constant 0 : index
    %c0_43 = arith.constant 0 : index
    %38 = vector.load %arg2[%c3_41, %c0_42, %c0_43] : memref<16x8x128xf32, #tpu.memory_space<vmem>>, vector<1x8x128xf32>
    %39 = vector.shape_cast %38 : vector<1x8x128xf32> to vector<8x128xf32>
    %c4_44 = arith.constant 4 : index
    %c0_45 = arith.constant 0 : index
    %c0_46 = arith.constant 0 : index
    %40 = vector.load %arg2[%c4_44, %c0_45, %c0_46] : memref<16x8x128xf32, #tpu.memory_space<vmem>>, vector<1x8x128xf32>
    %41 = vector.shape_cast %40 : vector<1x8x128xf32> to vector<8x128xf32>
    %c5_47 = arith.constant 5 : index
    %c0_48 = arith.constant 0 : index
    %c0_49 = arith.constant 0 : index
    %42 = vector.load %arg2[%c5_47, %c0_48, %c0_49] : memref<16x8x128xf32, #tpu.memory_space<vmem>>, vector<1x8x128xf32>
    %43 = vector.shape_cast %42 : vector<1x8x128xf32> to vector<8x128xf32>
    %c6_50 = arith.constant 6 : index
    %c0_51 = arith.constant 0 : index
    %c0_52 = arith.constant 0 : index
    %44 = vector.load %arg2[%c6_50, %c0_51, %c0_52] : memref<16x8x128xf32, #tpu.memory_space<vmem>>, vector<1x8x128xf32>
    %45 = vector.shape_cast %44 : vector<1x8x128xf32> to vector<8x128xf32>
    %c7_53 = arith.constant 7 : index
    %c0_54 = arith.constant 0 : index
    %c0_55 = arith.constant 0 : index
    %46 = vector.load %arg2[%c7_53, %c0_54, %c0_55] : memref<16x8x128xf32, #tpu.memory_space<vmem>>, vector<1x8x128xf32>
    %47 = vector.shape_cast %46 : vector<1x8x128xf32> to vector<8x128xf32>
    %c8_56 = arith.constant 8 : index
    %c0_57 = arith.constant 0 : index
    %c0_58 = arith.constant 0 : index
    %48 = vector.load %arg2[%c8_56, %c0_57, %c0_58] : memref<16x8x128xf32, #tpu.memory_space<vmem>>, vector<1x8x128xf32>
    %49 = vector.shape_cast %48 : vector<1x8x128xf32> to vector<8x128xf32>
    %c9_59 = arith.constant 9 : index
    %c0_60 = arith.constant 0 : index
    %c0_61 = arith.constant 0 : index
    %50 = vector.load %arg2[%c9_59, %c0_60, %c0_61] : memref<16x8x128xf32, #tpu.memory_space<vmem>>, vector<1x8x128xf32>
    %51 = vector.shape_cast %50 : vector<1x8x128xf32> to vector<8x128xf32>
    %c10_62 = arith.constant 10 : index
    %c0_63 = arith.constant 0 : index
    %c0_64 = arith.constant 0 : index
    %52 = vector.load %arg2[%c10_62, %c0_63, %c0_64] : memref<16x8x128xf32, #tpu.memory_space<vmem>>, vector<1x8x128xf32>
    %53 = vector.shape_cast %52 : vector<1x8x128xf32> to vector<8x128xf32>
    %c11_65 = arith.constant 11 : index
    %c0_66 = arith.constant 0 : index
    %c0_67 = arith.constant 0 : index
    %54 = vector.load %arg2[%c11_65, %c0_66, %c0_67] : memref<16x8x128xf32, #tpu.memory_space<vmem>>, vector<1x8x128xf32>
    %55 = vector.shape_cast %54 : vector<1x8x128xf32> to vector<8x128xf32>
    %c12_68 = arith.constant 12 : index
    %c0_69 = arith.constant 0 : index
    %c0_70 = arith.constant 0 : index
    %56 = vector.load %arg2[%c12_68, %c0_69, %c0_70] : memref<16x8x128xf32, #tpu.memory_space<vmem>>, vector<1x8x128xf32>
    %57 = vector.shape_cast %56 : vector<1x8x128xf32> to vector<8x128xf32>
    %c13_71 = arith.constant 13 : index
    %c0_72 = arith.constant 0 : index
    %c0_73 = arith.constant 0 : index
    %58 = vector.load %arg2[%c13_71, %c0_72, %c0_73] : memref<16x8x128xf32, #tpu.memory_space<vmem>>, vector<1x8x128xf32>
    %59 = vector.shape_cast %58 : vector<1x8x128xf32> to vector<8x128xf32>
    %c14_74 = arith.constant 14 : index
    %c0_75 = arith.constant 0 : index
    %c0_76 = arith.constant 0 : index
    %60 = vector.load %arg2[%c14_74, %c0_75, %c0_76] : memref<16x8x128xf32, #tpu.memory_space<vmem>>, vector<1x8x128xf32>
    %61 = vector.shape_cast %60 : vector<1x8x128xf32> to vector<8x128xf32>
    %c15_77 = arith.constant 15 : index
    %c0_78 = arith.constant 0 : index
    %c0_79 = arith.constant 0 : index
    %62 = vector.load %arg2[%c15_77, %c0_78, %c0_79] : memref<16x8x128xf32, #tpu.memory_space<vmem>>, vector<1x8x128xf32>
    %63 = vector.shape_cast %62 : vector<1x8x128xf32> to vector<8x128xf32>
    %c0_i32 = arith.constant 0 : i32
    %c8_i32 = arith.constant 8 : i32
    %64 = arith.muli %c0_i32, %c8_i32 : i32
    %65 = tpu.assume_multiple %64, 8 : i32
    %66 = arith.index_cast %65 : i32 to index
    %c0_80 = arith.constant 0 : index
    %67 = vector.load %arg3[%66, %c0_80] : memref<8x128xf32, #tpu.memory_space<vmem>>, vector<8x128xf32>
    %68 = arith.subf %67, %1 : vector<8x128xf32>
    %cst = arith.constant 0.000000e+00 : f32
    %69 = vector.broadcast %cst : f32 to vector<8x128xf32>
    %70 = arith.maximumf %68, %69 : vector<8x128xf32>
    %71 = arith.mulf %70, %33 : vector<8x128xf32>
    %72 = arith.subf %67, %3 : vector<8x128xf32>
    %cst_81 = arith.constant 0.000000e+00 : f32
    %73 = vector.broadcast %cst_81 : f32 to vector<8x128xf32>
    %74 = arith.maximumf %72, %73 : vector<8x128xf32>
    %75 = arith.mulf %74, %35 : vector<8x128xf32>
    %76 = arith.addf %71, %75 : vector<8x128xf32>
    %77 = arith.subf %67, %5 : vector<8x128xf32>
    %cst_82 = arith.constant 0.000000e+00 : f32
    %78 = vector.broadcast %cst_82 : f32 to vector<8x128xf32>
    %79 = arith.maximumf %77, %78 : vector<8x128xf32>
    %80 = arith.mulf %79, %37 : vector<8x128xf32>
    %81 = arith.addf %76, %80 : vector<8x128xf32>
    %82 = arith.subf %67, %7 : vector<8x128xf32>
    %cst_83 = arith.constant 0.000000e+00 : f32
    %83 = vector.broadcast %cst_83 : f32 to vector<8x128xf32>
    %84 = arith.maximumf %82, %83 : vector<8x128xf32>
    %85 = arith.mulf %84, %39 : vector<8x128xf32>
    %86 = arith.addf %81, %85 : vector<8x128xf32>
    %87 = arith.subf %67, %9 : vector<8x128xf32>
    %cst_84 = arith.constant 0.000000e+00 : f32
    %88 = vector.broadcast %cst_84 : f32 to vector<8x128xf32>
    %89 = arith.maximumf %87, %88 : vector<8x128xf32>
    %90 = arith.mulf %89, %41 : vector<8x128xf32>
    %91 = arith.addf %86, %90 : vector<8x128xf32>
    %92 = arith.subf %67, %11 : vector<8x128xf32>
    %cst_85 = arith.constant 0.000000e+00 : f32
    %93 = vector.broadcast %cst_85 : f32 to vector<8x128xf32>
    %94 = arith.maximumf %92, %93 : vector<8x128xf32>
    %95 = arith.mulf %94, %43 : vector<8x128xf32>
    %96 = arith.addf %91, %95 : vector<8x128xf32>
    %97 = arith.subf %67, %13 : vector<8x128xf32>
    %cst_86 = arith.constant 0.000000e+00 : f32
    %98 = vector.broadcast %cst_86 : f32 to vector<8x128xf32>
    %99 = arith.maximumf %97, %98 : vector<8x128xf32>
    %100 = arith.mulf %99, %45 : vector<8x128xf32>
    %101 = arith.addf %96, %100 : vector<8x128xf32>
    %102 = arith.subf %67, %15 : vector<8x128xf32>
    %cst_87 = arith.constant 0.000000e+00 : f32
    %103 = vector.broadcast %cst_87 : f32 to vector<8x128xf32>
    %104 = arith.maximumf %102, %103 : vector<8x128xf32>
    %105 = arith.mulf %104, %47 : vector<8x128xf32>
    %106 = arith.addf %101, %105 : vector<8x128xf32>
    %107 = arith.subf %67, %17 : vector<8x128xf32>
    %cst_88 = arith.constant 0.000000e+00 : f32
    %108 = vector.broadcast %cst_88 : f32 to vector<8x128xf32>
    %109 = arith.maximumf %107, %108 : vector<8x128xf32>
    %110 = arith.mulf %109, %49 : vector<8x128xf32>
    %111 = arith.addf %106, %110 : vector<8x128xf32>
    %112 = arith.subf %67, %19 : vector<8x128xf32>
    %cst_89 = arith.constant 0.000000e+00 : f32
    %113 = vector.broadcast %cst_89 : f32 to vector<8x128xf32>
    %114 = arith.maximumf %112, %113 : vector<8x128xf32>
    %115 = arith.mulf %114, %51 : vector<8x128xf32>
    %116 = arith.addf %111, %115 : vector<8x128xf32>
    %117 = arith.subf %67, %21 : vector<8x128xf32>
    %cst_90 = arith.constant 0.000000e+00 : f32
    %118 = vector.broadcast %cst_90 : f32 to vector<8x128xf32>
    %119 = arith.maximumf %117, %118 : vector<8x128xf32>
    %120 = arith.mulf %119, %53 : vector<8x128xf32>
    %121 = arith.addf %116, %120 : vector<8x128xf32>
    %122 = arith.subf %67, %23 : vector<8x128xf32>
    %cst_91 = arith.constant 0.000000e+00 : f32
    %123 = vector.broadcast %cst_91 : f32 to vector<8x128xf32>
    %124 = arith.maximumf %122, %123 : vector<8x128xf32>
    %125 = arith.mulf %124, %55 : vector<8x128xf32>
    %126 = arith.addf %121, %125 : vector<8x128xf32>
    %127 = arith.subf %67, %25 : vector<8x128xf32>
    %cst_92 = arith.constant 0.000000e+00 : f32
    %128 = vector.broadcast %cst_92 : f32 to vector<8x128xf32>
    %129 = arith.maximumf %127, %128 : vector<8x128xf32>
    %130 = arith.mulf %129, %57 : vector<8x128xf32>
    %131 = arith.addf %126, %130 : vector<8x128xf32>
    %132 = arith.subf %67, %27 : vector<8x128xf32>
    %cst_93 = arith.constant 0.000000e+00 : f32
    %133 = vector.broadcast %cst_93 : f32 to vector<8x128xf32>
    %134 = arith.maximumf %132, %133 : vector<8x128xf32>
    %135 = arith.mulf %134, %59 : vector<8x128xf32>
    %136 = arith.addf %131, %135 : vector<8x128xf32>
    %137 = arith.subf %67, %29 : vector<8x128xf32>
    %cst_94 = arith.constant 0.000000e+00 : f32
    %138 = vector.broadcast %cst_94 : f32 to vector<8x128xf32>
    %139 = arith.maximumf %137, %138 : vector<8x128xf32>
    %140 = arith.mulf %139, %61 : vector<8x128xf32>
    %141 = arith.addf %136, %140 : vector<8x128xf32>
    %142 = arith.subf %67, %31 : vector<8x128xf32>
    %cst_95 = arith.constant 0.000000e+00 : f32
    %143 = vector.broadcast %cst_95 : f32 to vector<8x128xf32>
    %144 = arith.maximumf %142, %143 : vector<8x128xf32>
    %145 = arith.mulf %144, %63 : vector<8x128xf32>
    %146 = arith.addf %141, %145 : vector<8x128xf32>
    %147 = arith.index_cast %65 : i32 to index
    %c0_96 = arith.constant 0 : index
    %148 = vector.load %arg4[%147, %c0_96] : memref<8x128xf32, #tpu.memory_space<vmem>>, vector<8x128xf32>
    tpu.vector_store %arg4[%147, %c0_96], %146 {strides = array<i32>} : memref<8x128xf32, #tpu.memory_space<vmem>>, vector<8x128xf32>,
    %c1_i32 = arith.constant 1 : i32
    return
  }
  func.func @transform_0(%arg0: i32) -> (i32, i32, i32) {
    %c0_i32 = arith.constant 0 : i32
    %c0_i32_0 = arith.constant 0 : i32
    %c0_i32_1 = arith.constant 0 : i32
    %c0_i32_2 = arith.constant 0 : i32
    return %c0_i32, %c0_i32_0, %c0_i32_1 : i32, i32, i32
  }
  func.func @transform_1(%arg0: i32) -> (i32, i32, i32) {
    %c0_i32 = arith.constant 0 : i32
    %c0_i32_0 = arith.constant 0 : i32
    %c0_i32_1 = arith.constant 0 : i32
    %c0_i32_2 = arith.constant 0 : i32
    return %c0_i32, %c0_i32_0, %c0_i32_1 : i32, i32, i32
  }
  func.func @transform_2(%arg0: i32) -> (i32, i32) {
    %c0_i32 = arith.constant 0 : i32
    %c0_i32_0 = arith.constant 0 : i32
    return %arg0, %c0_i32 : i32, i32
  }
  func.func @transform_3(%arg0: i32) -> (i32, i32) {
    %c0_i32 = arith.constant 0 : i32
    %c0_i32_0 = arith.constant 0 : i32
    return %arg0, %c0_i32 : i32, i32
  }
}

</mosaic_0001>

<llo_original>
// kernel: tpu_custom_call.1
$region0: #{tpu_custom_call.1}
  #allocation0 [shape = 'u32[]', space=smem, size = 0x4, offset = 0x4, fixed_abs, tag = 'smem constant byte address 0x4 - core index']
  #allocation1 [shape = 'u32[144,128]{1,0:T(1,128)}', space=vmem, size = 0x12000, scoped, tag = 'internal scratch']
  %s0 = inlined_call_operand.hbm [shape: f32[16,8,128], index: 0, kind: input, shape index: {}]
  %s1 = inlined_call_operand.hbm [shape: f32[16,8,128], index: 1, kind: input, shape index: {}]
  %s2 = inlined_call_operand.hbm [shape: f32[8,128], index: 2, kind: input, shape index: {}]
  %s3 = inlined_call_operand.hbm [shape: f32[8,128], index: 3, kind: output, shape index: {}]
  %s4 = sld [smem:[#allocation0]]
  $region34: #{tpu_custom_call.1} parent=0
    _
  %s6 = ssub.s32 1, %s4
  %s7 = scalar_select 0, %s6, %s4
  $region1: #{tpu_custom_call.1} parent=0
    #allocation2 [shape = 'u8[65536]{0}', space=vmem, size = 0x10000, scoped, tag = 'input window, operand 0, single buffered']
    #allocation3 [shape = 's32[1]{0}', space=sflag, size = 0x4, scoped, tag = 'scoped memory for tpu_custom_call.1']
    #allocation4 [shape = 's32[1]{0}', space=sflag, size = 0x4, scoped, tag = 'scoped memory for tpu_custom_call.1']
    #allocation5 [shape = 'u8[65536]{0}', space=vmem, size = 0x10000, scoped, tag = 'input window, operand 1, single buffered']
    #allocation6 [shape = 's32[1]{0}', space=sflag, size = 0x4, scoped, tag = 'scoped memory for tpu_custom_call.1']
    #allocation7 [shape = 'u8[4096]{0}', space=vmem, size = 0x1000, scoped, tag = 'input window, operand 2, single buffered']
    #allocation8 [shape = 'u8[4096]{0}', space=vmem, size = 0x1000, scoped, tag = 'output window, operand 0, single buffered']
    %8 = vsyncpa [#allocation3], 0
    %9 = vsyncpa [#allocation6], 0
    %10 = vsyncpa [#allocation4], 0
    // Predicated region
    $region2: #{tpu_custom_call.1} parent=1 // pred_check
      _
    $region3: #{tpu_custom_call.1} parent=1 // pred_check_branch
      %12 = sbr.rel (0) target = $region5
    $region4: #{tpu_custom_call.1} parent=1 // pred_region
      %s14 = ssub.s32 2048, 2048
      %15 = vsyncadd [#allocation3], %s14
      %s16 = sshll.u32 [#allocation2], 4
      %s17 = int_to_ptr.vmem [resolvable:$true] %s16
      %22 = dma.hbm_to_vmem [thread:$0]  %s0, 2048, %s17, [#allocation3], 128, 128, 8
    $region5: #{tpu_custom_call.1} parent=1 // pred_fallthru
      _
    // Predicated region
    $region6: #{tpu_custom_call.1} parent=1 // pred_check
      _
    $region7: #{tpu_custom_call.1} parent=1 // pred_check_branch
      %24 = sbr.rel (0) target = $region9
    $region8: #{tpu_custom_call.1} parent=1 // pred_region
      %s26 = ssub.s32 2048, 2048
      %27 = vsyncadd [#allocation6], %s26
      %s28 = sshll.u32 [#allocation5], 4
      %s29 = int_to_ptr.vmem [resolvable:$true] %s28
      %34 = dma.hbm_to_vmem [thread:$0]  %s1, 2048, %s29, [#allocation6], 128, 128, 8
    $region9: #{tpu_custom_call.1} parent=1 // pred_fallthru
      _
    // Predicated region
    $region10: #{tpu_custom_call.1} parent=1 // pred_check
      _
    $region11: #{tpu_custom_call.1} parent=1 // pred_check_branch
      %36 = sbr.rel (0) target = $region13
    $region12: #{tpu_custom_call.1} parent=1 // pred_region
      %s38 = ssub.s32 128, 128
      %39 = vsyncadd [#allocation6], %s38
      %s41 = sshll.u32 [#allocation7], 4
      %s42 = int_to_ptr.vmem [resolvable:$true] %s41
      %44 = dma.hbm_to_vmem [thread:$0]  %s2, 128, %s42, [#allocation6]
    $region13: #{tpu_custom_call.1} parent=1 // pred_fallthru
      _
    // Predicated region
    $region14: #{tpu_custom_call.1} parent=1 // pred_check
      _
    $region15: #{tpu_custom_call.1} parent=1 // pred_check_branch
      %46 = sbr.rel (0) target = $region17
    $region16: #{tpu_custom_call.1} parent=1 // pred_region
      %47 = dma.done [#allocation3], 2048
    $region17: #{tpu_custom_call.1} parent=1 // pred_fallthru
      _
    // Predicated region
    $region18: #{tpu_custom_call.1} parent=1 // pred_check
      _
    $region19: #{tpu_custom_call.1} parent=1 // pred_check_branch
      %49 = sbr.rel (0) target = $region21
    $region20: #{tpu_custom_call.1} parent=1 // pred_region
      %50 = dma.done [#allocation6], 2048
    $region21: #{tpu_custom_call.1} parent=1 // pred_fallthru
      _
    // Predicated region
    $region22: #{tpu_custom_call.1} parent=1 // pred_check
      _
    $region23: #{tpu_custom_call.1} parent=1 // pred_check_branch
      %52 = sbr.rel (0) target = $region25
    $region24: #{tpu_custom_call.1} parent=1 // pred_region
      %53 = dma.done [#allocation6], 128
    $region25: #{tpu_custom_call.1} parent=1 // pred_fallthru
      _
    %v54 = vld [vmem:[#allocation2] sm:$0xff]
    %s55 = scalar_lea.vmem [#allocation2], 8
    %v56 = vld [vmem:[%s55] sm:$0xff]
    %s57 = scalar_lea.vmem [#allocation2], 16
    %v58 = vld [vmem:[%s57] sm:$0xff]
    %s59 = scalar_lea.vmem [#allocation2], 24
    %v60 = vld [vmem:[%s59] sm:$0xff]
    %s61 = scalar_lea.vmem [#allocation2], 32
    %v62 = vld [vmem:[%s61] sm:$0xff]
    %s63 = scalar_lea.vmem [#allocation2], 40
    %v64 = vld [vmem:[%s63] sm:$0xff]
    %s65 = scalar_lea.vmem [#allocation2], 48
    %v66 = vld [vmem:[%s65] sm:$0xff]
    %s67 = scalar_lea.vmem [#allocation2], 56
    %v68 = vld [vmem:[%s67] sm:$0xff]
    %s69 = scalar_lea.vmem [#allocation2], 64
    %v70 = vld [vmem:[%s69] sm:$0xff]
    %s71 = scalar_lea.vmem [#allocation2], 72
    %v72 = vld [vmem:[%s71] sm:$0xff]
    %s73 = scalar_lea.vmem [#allocation2], 80
    %v74 = vld [vmem:[%s73] sm:$0xff]
    %s75 = scalar_lea.vmem [#allocation2], 88
    %v76 = vld [vmem:[%s75] sm:$0xff]
    %s77 = scalar_lea.vmem [#allocation2], 96
    %v78 = vld [vmem:[%s77] sm:$0xff]
    %s79 = scalar_lea.vmem [#allocation2], 104
    %v80 = vld [vmem:[%s79] sm:$0xff]
    %s81 = scalar_lea.vmem [#allocation2], 112
    %v82 = vld [vmem:[%s81] sm:$0xff]
    %s83 = scalar_lea.vmem [#allocation2], 120
    %v84 = vld [vmem:[%s83] sm:$0xff]
    %v85 = vld [vmem:[#allocation5] sm:$0xff]
    %s86 = scalar_lea.vmem [#allocation5], 8
    %v87 = vld [vmem:[%s86] sm:$0xff]
    %s88 = scalar_lea.vmem [#allocation5], 16
    %v89 = vld [vmem:[%s88] sm:$0xff]
    %s90 = scalar_lea.vmem [#allocation5], 24
    %v91 = vld [vmem:[%s90] sm:$0xff]
    %s92 = scalar_lea.vmem [#allocation5], 32
    %v93 = vld [vmem:[%s92] sm:$0xff]
    %s94 = scalar_lea.vmem [#allocation5], 40
    %v95 = vld [vmem:[%s94] sm:$0xff]
    %s96 = scalar_lea.vmem [#allocation5], 48
    %v97 = vld [vmem:[%s96] sm:$0xff]
    %s98 = scalar_lea.vmem [#allocation5], 56
    %v99 = vld [vmem:[%s98] sm:$0xff]
    %s100 = scalar_lea.vmem [#allocation5], 64
    %v101 = vld [vmem:[%s100] sm:$0xff]
    %s102 = scalar_lea.vmem [#allocation5], 72
    %v103 = vld [vmem:[%s102] sm:$0xff]
    %s104 = scalar_lea.vmem [#allocation5], 80
    %v105 = vld [vmem:[%s104] sm:$0xff]
    %s106 = scalar_lea.vmem [#allocation5], 88
    %v107 = vld [vmem:[%s106] sm:$0xff]
    %s108 = scalar_lea.vmem [#allocation5], 96
    %v109 = vld [vmem:[%s108] sm:$0xff]
    %s110 = scalar_lea.vmem [#allocation5], 104
    %v111 = vld [vmem:[%s110] sm:$0xff]
    %s112 = scalar_lea.vmem [#allocation5], 112
    %v113 = vld [vmem:[%s112] sm:$0xff]
    %s114 = scalar_lea.vmem [#allocation5], 120
    %v115 = vld [vmem:[%s114] sm:$0xff]
    %v116 = vld [vmem:[#allocation7] sm:$0xff]
    %v117 = vsub.f32 %v116, %v54
    %v118 = vmax.f32 %v117, 0.0
    %v119 = vmul.f32 %v118, %v85
    %v120 = vsub.f32 %v116, %v56
    %v121 = vmax.f32 %v120, 0.0
    %v122 = vmul.f32 %v121, %v87
    %v123 = vadd.f32 %v119, %v122
    %v124 = vsub.f32 %v116, %v58
    %v125 = vmax.f32 %v124, 0.0
    %v126 = vmul.f32 %v125, %v89
    %v127 = vadd.f32 %v123, %v126
    %v128 = vsub.f32 %v116, %v60
    %v129 = vmax.f32 %v128, 0.0
    %v130 = vmul.f32 %v129, %v91
    %v131 = vadd.f32 %v127, %v130
    %v132 = vsub.f32 %v116, %v62
    %v133 = vmax.f32 %v132, 0.0
    %v134 = vmul.f32 %v133, %v93
    %v135 = vadd.f32 %v131, %v134
    %v136 = vsub.f32 %v116, %v64
    %v137 = vmax.f32 %v136, 0.0
    %v138 = vmul.f32 %v137, %v95
    %v139 = vadd.f32 %v135, %v138
    %v140 = vsub.f32 %v116, %v66
    %v141 = vmax.f32 %v140, 0.0
    %v142 = vmul.f32 %v141, %v97
    %v143 = vadd.f32 %v139, %v142
    %v144 = vsub.f32 %v116, %v68
    %v145 = vmax.f32 %v144, 0.0
    %v146 = vmul.f32 %v145, %v99
    %v147 = vadd.f32 %v143, %v146
    %v148 = vsub.f32 %v116, %v70
    %v149 = vmax.f32 %v148, 0.0
    %v150 = vmul.f32 %v149, %v101
    %v151 = vadd.f32 %v147, %v150
    %v152 = vsub.f32 %v116, %v72
    %v153 = vmax.f32 %v152, 0.0
    %v154 = vmul.f32 %v153, %v103
    %v155 = vadd.f32 %v151, %v154
    %v156 = vsub.f32 %v116, %v74
    %v157 = vmax.f32 %v156, 0.0
    %v158 = vmul.f32 %v157, %v105
    %v159 = vadd.f32 %v155, %v158
    %v160 = vsub.f32 %v116, %v76
    %v161 = vmax.f32 %v160, 0.0
    %v162 = vmul.f32 %v161, %v107
    %v163 = vadd.f32 %v159, %v162
    %v164 = vsub.f32 %v116, %v78
    %v165 = vmax.f32 %v164, 0.0
    %v166 = vmul.f32 %v165, %v109
    %v167 = vadd.f32 %v163, %v166
    %v168 = vsub.f32 %v116, %v80
    %v169 = vmax.f32 %v168, 0.0
    %v170 = vmul.f32 %v169, %v111
    %v171 = vadd.f32 %v167, %v170
    %v172 = vsub.f32 %v116, %v82
    %v173 = vmax.f32 %v172, 0.0
    %v174 = vmul.f32 %v173, %v113
    %v175 = vadd.f32 %v171, %v174
    %v176 = vsub.f32 %v116, %v84
    %v177 = vmax.f32 %v176, 0.0
    %v178 = vmul.f32 %v177, %v115
    %v179 = vadd.f32 %v175, %v178
    %180 = vst [vmem:[#allocation8] sm:$0xff] %v179
    // Predicated region
    $region26: #{tpu_custom_call.1} parent=1 // pred_check
      _
    $region27: #{tpu_custom_call.1} parent=1 // pred_check_branch
      %182 = sbr.rel (0) target = $region29
    $region28: #{tpu_custom_call.1} parent=1 // pred_region
      %s184 = ssub.s32 128, 128
      %185 = vsyncadd [#allocation4], %s184
      %s187 = sshll.u32 [#allocation8], 4
      %s188 = int_to_ptr.vmem [resolvable:$true] %s187
      %190 = dma.vmem_to_hbm [thread:$0]  %s188, 128, %s3, [#allocation4]
    $region29: #{tpu_custom_call.1} parent=1 // pred_fallthru
      _
    // Predicated region
    $region30: #{tpu_custom_call.1} parent=1 // pred_check
      _
    $region31: #{tpu_custom_call.1} parent=1 // pred_check_branch
      %192 = sbr.rel (0) target = $region33
    $region32: #{tpu_custom_call.1} parent=1 // pred_region
      %193 = dma.done [#allocation4], 128
    $region33: #{tpu_custom_call.1} parent=1 // pred_fallthru
      _
    %194 = vsyncpa [#allocation3], 1
    %195 = vsyncpa [#allocation6], 1
    %196 = vsyncpa [#allocation4], 1

</llo_original>
